<compile_context>
chip_gen: v7x
topology: tpu7x:2x2x1
jax: 0.10.0
libtpu: 0.0.40
codegen_flags: <defaults>
</compile_context>

<pallas_src>
import functools

import jax
import jax.numpy as jnp
from jax.experimental import pallas as pl
from jax.experimental.pallas import tpu as pltpu

# Deterministic "parameters" from __init__ (p and re_scale are unused in forward).
MARGIN = 1.0
P = 2
RE_SCALE = 1.0
# The wrapper adds the N=1 (y = 0) column's contribution as B * MARGIN, which
# is only valid when max(0, margin) == margin.
assert MARGIN >= 0.0, "SpecialLoss kernel shortcut assumes a non-negative margin"


def _tail_mask(per, b_total, tb):
    """Zero rows of the (partial) last block. Uses a select (not a multiply) so
    NaNs from unspecified pad rows are discarded, never propagated."""
    i = pl.program_id(0)
    row = jax.lax.broadcasted_iota(jnp.int32, per.shape, 0)
    return jnp.where(i * tb + row < b_total, per, 0.0)


def _write_partial(part_ref, per):
    """Reduce [TB, 1] hinge values to a scalar and fill the (1, 8, 128) block."""
    total = jnp.sum(per, axis=0, keepdims=True)                     # (1, 1)
    part_ref[...] = jnp.broadcast_to(total.reshape(1, 1, 1), part_ref.shape)


def _kernel_sliced(pos_ref, neg_ref, part_ref, *, b_total, tb):
    """Fast path: pos_ref/neg_ref are [TB, D] tiles of score[:, 0, 0, :] and
    score[:, 1, 0, :]; only the needed half of each batch row was DMA'd."""
    pos = pos_ref[...].astype(jnp.float32)
    neg = neg_ref[...].astype(jnp.float32)
    diff = (jnp.sum(jnp.sqrt(pos), axis=1, keepdims=True)
            - jnp.sum(jnp.sqrt(neg), axis=1, keepdims=True))        # [TB, 1]
    per = jnp.maximum(0.0, diff + MARGIN)
    if b_total % tb != 0:            # compile-time: only emit mask if a tail exists
        per = _tail_mask(per, b_total, tb)
    _write_partial(part_ref, per)


def _kernel_masked(w_ref, x_ref, part_ref, *, b_total, tb):
    """Fallback path: x_ref is the full [TB, 4D] slab; w_ref is a resident
    (1, 4D) row with +1 on pos/N=0 cols, -1 on neg/N=0 cols, 0 elsewhere."""
    x = x_ref[...].astype(jnp.float32)
    w = w_ref[...]                                                   # (1, 4D)
    sq = jnp.sqrt(x * jnp.abs(w))      # unused cols -> sqrt(0) == 0 (no NaN injection)
    diff = jnp.sum(sq * w, axis=1, keepdims=True)                    # [TB, 1] = pos0 - neg0
    per = jnp.maximum(0.0, diff + MARGIN)
    if b_total % tb != 0:
        per = _tail_mask(per, b_total, tb)
    _write_partial(part_ref, per)


def _choose_tb(b, bytes_per_row, *, target_bytes=4 << 20, vmem_budget=24 << 20):
    """Rows per tile: ~4 MiB per input buffer, double-buffered working set under
    ~24 MiB, and at least two grid blocks when B >= 16 (feeds both v7x cores)."""
    cap = max(8, vmem_budget // (2 * bytes_per_row))
    tb = min(max(target_bytes // bytes_per_row, 8), cap)
    tb = max(8, (tb // 8) * 8)
    if b >= 16:
        tb = min(tb, max(8, (pl.cdiv(b, 2) // 8) * 8))
    if b <= tb:
        return b                       # single block covering the whole (small) batch
    return tb


def _sanitize_tb(tb, b):
    tb = min(tb, b)
    if tb != b:
        tb = max(8, (tb // 8) * 8)     # sublane-dim rule: multiple of 8 or full extent
    return tb


def special_loss(score, tb=None):
    """score: [B, 2(pos/neg), 2(N; matches y=[-1,0]), D] -> scalar mean loss."""
    B, two_a, n, D = score.shape
    assert two_a == 2 and n == 2, "SpecialLoss requires score[:, 2, 2, D] (y = [-1, 0])"

    itemsize = jnp.dtype(score.dtype).itemsize
    C = 4 * D
    x = score.reshape(B, C)            # free contiguous reshape -> lane-dense slab

    compiler_params = pltpu.CompilerParams(
        dimension_semantics=("parallel",),
        vmem_limit_bytes=48 << 20)

    if D % 128 == 0:
        # Fast path: DMA only the pos/N=0 and neg/N=0 columns (half the bytes).
        bytes_per_row = 2 * D * itemsize
        TB = _choose_tb(B, bytes_per_row) if tb is None else _sanitize_tb(tb, B)
        nblk = pl.cdiv(B, TB)
        kernel = functools.partial(_kernel_sliced, b_total=B, tb=TB)
        partials = pl.pallas_call(
            kernel,
            out_shape=jax.ShapeDtypeStruct((nblk, 8, 128), jnp.float32),
            grid=(nblk,),
            in_specs=[pl.BlockSpec((TB, D), lambda i: (i, 0)),   # cols [0, D)   = pos, N=0
                      pl.BlockSpec((TB, D), lambda i: (i, 2))],  # cols [2D, 3D) = neg, N=0
            out_specs=pl.BlockSpec((1, 8, 128), lambda i: (i, 0, 0)),
            compiler_params=compiler_params,
        )(x, x)
    else:
        # Fallback: full slab + tiny resident signed-weight row (no per-step iota).
        bytes_per_row = C * itemsize
        TB = _choose_tb(B, bytes_per_row) if tb is None else _sanitize_tb(tb, B)
        nblk = pl.cdiv(B, TB)
        col = jnp.arange(C)
        w = jnp.where(col < D, 1.0,
                      jnp.where((col >= 2 * D) & (col < 3 * D), -1.0, 0.0)
                      ).astype(jnp.float32).reshape(1, C)
        kernel = functools.partial(_kernel_masked, b_total=B, tb=TB)
        partials = pl.pallas_call(
            kernel,
            out_shape=jax.ShapeDtypeStruct((nblk, 8, 128), jnp.float32),
            grid=(nblk,),
            in_specs=[pl.BlockSpec((1, C), lambda i: (0, 0)),    # resident weight row
                      pl.BlockSpec((TB, C), lambda i: (i, 0))],
            out_specs=pl.BlockSpec((1, 8, 128), lambda i: (i, 0, 0)),
            compiler_params=compiler_params,
        )(w, x)

    # N=1 column (y = 0): each batch row contributes max(0, margin) == margin.
    total = jnp.sum(partials[:, 0, 0]) + jnp.float32(B) * jnp.float32(MARGIN)
    return total / jnp.float32(2 * B)


def special_loss_ref(score):
    """Pure-JAX reference mirroring the PyTorch forward (reduction='mean')."""
    dist = jnp.sqrt(score.astype(jnp.float32)).sum(-1)
    pos = dist[:, 0, :]
    neg = dist[:, 1, :]
    y = jnp.array([-1.0, 0.0], jnp.float32)
    per = jnp.maximum(0.0, -y * (pos - neg) + MARGIN)
    return per.mean()


if __name__ == "__main__":
    k1, k2, k3 = jax.random.split(jax.random.PRNGKey(0), 3)

    # 1) Fallback path (D % 128 != 0): lane-dense [16, 128] slab, 2 blocks.
    score = jax.random.uniform(k1, (16, 2, 2, 32), jnp.float32, 0.0, 4.0)
    out = jax.block_until_ready(special_loss(score))
    ref = special_loss_ref(score)
    assert jnp.allclose(out, ref, rtol=1e-5, atol=1e-5), (out, ref)

    # 2) Fallback path, forced tiny tiles -> multi-block grid + masked tail rows.
    score2 = jax.random.uniform(k2, (20, 2, 2, 32), jnp.float32, 0.0, 4.0)
    out2 = jax.block_until_ready(special_loss(score2, tb=8))
    ref2 = special_loss_ref(score2)
    assert jnp.allclose(out2, ref2, rtol=1e-5, atol=1e-5), (out2, ref2)

    # 3) Fast path (D % 128 == 0): only pos/N=0 and neg/N=0 columns are DMA'd;
    #    3 blocks with a masked partial tail block.
    score3 = jax.random.uniform(k3, (20, 2, 2, 128), jnp.float32, 0.0, 4.0)
    out3 = jax.block_until_ready(special_loss(score3))
    ref3 = special_loss_ref(score3)
    assert jnp.allclose(out3, ref3, rtol=1e-5, atol=1e-5), (out3, ref3)

    print("KERNEL_OK")
</pallas_src>

<mosaic_0001>
module attributes {stable_mosaic.version = 11 : i64} {
  func.func @_kernel_masked(%arg0: i32, %arg1: memref<1x128xf32, #tpu.memory_space<vmem>>, %arg2: memref<8x128xf32, #tpu.memory_space<vmem>>, %arg3: memref<1x8x128xf32, #tpu.memory_space<vmem>>) attributes {dimension_semantics = [#tpu.dimension_semantics<parallel>], iteration_bounds = array<i64: 2>, scalar_prefetch = 0 : i64, scratch_operands = 0 : i64, tpu.core_type = #tpu.core_type<tc>, window_params = [{pipeline_mode = #tpu.pipeline_mode<synchronous>, transform_indices = @transform_0, window_bounds = array<i64: 1, 128>}, {transform_indices = @transform_1, window_bounds = array<i64: 8, 128>}, {transform_indices = @transform_2, window_bounds = array<i64: 1, 8, 128>}]} {
    %c0 = arith.constant 0 : index
    %c0_0 = arith.constant 0 : index
    %0 = vector.load %arg2[%c0, %c0_0] : memref<8x128xf32, #tpu.memory_space<vmem>>, vector<8x128xf32>
    %c0_1 = arith.constant 0 : index
    %c0_2 = arith.constant 0 : index
    %1 = vector.load %arg1[%c0_1, %c0_2] : memref<1x128xf32, #tpu.memory_space<vmem>>, vector<1x128xf32>
    %2 = math.absf %1 : vector<1x128xf32>
    %3 = vector.broadcast %2 : vector<1x128xf32> to vector<8x128xf32>
    %4 = arith.mulf %0, %3 : vector<8x128xf32>
    %5 = math.sqrt %4 : vector<8x128xf32>
    %6 = vector.broadcast %1 : vector<1x128xf32> to vector<8x128xf32>
    %7 = arith.mulf %5, %6 : vector<8x128xf32>
    %cst = arith.constant dense<0.000000e+00> : vector<8xf32>
    %8 = vector.multi_reduction <add>, %7, %cst [1] : vector<8x128xf32> to vector<8xf32>
    %9 = vector.shape_cast %8 : vector<8xf32> to vector<8x1xf32>
    %cst_3 = arith.constant 1.000000e+00 : f32
    %10 = vector.broadcast %cst_3 : f32 to vector<8x1xf32>
    %11 = arith.addf %9, %10 : vector<8x1xf32>
    %cst_4 = arith.constant 0.000000e+00 : f32
    %12 = vector.broadcast %cst_4 : f32 to vector<8x1xf32>
    %13 = arith.maximumf %12, %11 : vector<8x1xf32>
    %cst_5 = arith.constant dense<0.000000e+00> : vector<1xf32>
    %14 = vector.multi_reduction <add>, %13, %cst_5 [0] : vector<8x1xf32> to vector<1xf32>
    %15 = vector.shape_cast %14 : vector<1xf32> to vector<1x1xf32>
    %16 = vector.shape_cast %15 : vector<1x1xf32> to vector<1x1x1xf32>
    %17 = vector.shape_cast %16 : vector<1x1x1xf32> to vector<1x1x1xf32>
    %18 = vector.broadcast %17 : vector<1x1x1xf32> to vector<1x8x128xf32>
    %c0_6 = arith.constant 0 : index
    %c0_7 = arith.constant 0 : index
    %c0_8 = arith.constant 0 : index
    %19 = vector.load %arg3[%c0_6, %c0_7, %c0_8] : memref<1x8x128xf32, #tpu.memory_space<vmem>>, vector<1x8x128xf32>
    tpu.vector_store %arg3[%c0_6, %c0_7, %c0_8], %18 {strides = array<i32>} : memref<1x8x128xf32, #tpu.memory_space<vmem>>, vector<1x8x128xf32>,
    return
  }
  func.func @transform_0(%arg0: i32) -> (i32, i32) {
    %c0_i32 = arith.constant 0 : i32
    %c0_i32_0 = arith.constant 0 : i32
    %c0_i32_1 = arith.constant 0 : i32
    return %c0_i32, %c0_i32_0 : i32, i32
  }
  func.func @transform_1(%arg0: i32) -> (i32, i32) {
    %c0_i32 = arith.constant 0 : i32
    %c0_i32_0 = arith.constant 0 : i32
    return %arg0, %c0_i32 : i32, i32
  }
  func.func @transform_2(%arg0: i32) -> (i32, i32, i32) {
    %c0_i32 = arith.constant 0 : i32
    %c0_i32_0 = arith.constant 0 : i32
    %c0_i32_1 = arith.constant 0 : i32
    return %arg0, %c0_i32, %c0_i32_0 : i32, i32, i32
  }
}

</mosaic_0001>

<llo_original>
// kernel: tpu_custom_call.1
$region0: #{tpu_custom_call.1}
  #allocation0 [shape = 'u32[]', space=smem, size = 0x4, offset = 0x4, fixed_abs, tag = 'smem constant byte address 0x4 - core index']
  #allocation1 [shape = 'u32[144,128]{1,0:T(1,128)}', space=vmem, size = 0x12000, scoped, tag = 'internal scratch']
  %s0 = inlined_call_operand.hbm [shape: f32[1,128], index: 0, kind: input, shape index: {}]
  %s1 = inlined_call_operand.hbm [shape: f32[16,128], index: 1, kind: input, shape index: {}]
  %s2 = inlined_call_operand.hbm [shape: f32[2,8,128], index: 2, kind: output, shape index: {}]
  %s3 = sld [smem:[#allocation0]]
  $region49: #{tpu_custom_call.1} parent=0
    _
  %s5 = ssub.s32 1, %s3
  %s6 = scalar_select 0, %s5, %s3
  $region1: #{tpu_custom_call.1} parent=0
    #allocation2 [shape = 'u8[512]{0}', space=vmem, size = 0x400, scoped, tag = 'input window, operand 0, single buffered']
    #allocation3 [shape = 's32[2]{0}', space=sflag, size = 0x8, scoped, tag = 'scoped memory for tpu_custom_call.1']
    #allocation4 [shape = 's32[2]{0}', space=sflag, size = 0x8, scoped, tag = 'scoped memory for tpu_custom_call.1']
    #allocation5 [shape = 'u8[8192]{0}', space=vmem, size = 0x2000, scoped, tag = 'input window, operand 1']
    #allocation6 [shape = 's32[2]{0}', space=sflag, size = 0x8, scoped, tag = 'scoped memory for tpu_custom_call.1']
    #allocation7 [shape = 'u8[8192]{0}', space=vmem, size = 0x2000, scoped, tag = 'output window, operand 0']
    %7 = vsyncpa [#allocation3], 0
    %8 = vsyncpa [#allocation6], 0
    %s9 = scalar_lea.sflag [#allocation6], 1
    %10 = vsyncpa %s9, 0
    %11 = vsyncpa [#allocation4], 0
    %s12 = scalar_lea.sflag [#allocation4], 1
    %13 = vsyncpa %s12, 0
    loop: start=0, step=1, limit=4
    $region2: #{tpu_custom_call.1} parent=1 // loop_pre_header
      _
    $region3: #{tpu_custom_call.1} parent=1 // loop_header
      %s15 = sphi 0, %s19
      %p16 = scmp.ge.s32.totalorder %s15, 4
      %s23 = sphi 0, %s23
      %s25 = sphi 0, %s23
      %s26 = sphi 0, %s25
      %s40 = sphi 0, %s26
      %s46 = sphi 0, %s48
      %s49 = sphi 0, %s46
      %s50 = sphi 0, %s49
      %s66 = sphi 0, %s50
      %s72 = sphi 0, %s74
      %s75 = sphi 0, %s72
      %s76 = sphi 0, %s75
      %s92 = sphi 0, %s76
    $region4: #{tpu_custom_call.1} parent=1 // loop_header_branch
      %18 = sbr.rel (%p16) target = $region8
    $region5: #{tpu_custom_call.1} parent=1 // loop_body
      %s20 = ssub.s32 %s15, 1
      %s21 = ssub.s32 %s15, 2
      %s22 = sadd.s32 %s15, 1
      %s24 = sadd.s32 %s23, 1
      %p27 = scmp.eq.s32.totalorder %s15, 1
      %p28 = scmp.ne.s32.totalorder %s23, %s25
      %p29 = scmp.eq.s32.totalorder %s15, 0
      %p30 = por %p28, %p29
      %p31 = scmp.ne.s32.totalorder %s23, %s25
      %p32 = scmp.eq.s32.totalorder %s20, 1
      %p33 = por %p31, %p32
      %p34 = scmp.ne.s32.totalorder %s25, %s26
      %p35 = scmp.eq.s32.totalorder %s20, 0
      %p36 = por %p34, %p35
      %p37 = scmp.ne.s32.totalorder %s25, %s26
      %p38 = scmp.eq.s32.totalorder %s21, 1
      %p39 = por %p37, %p38
      %p41 = scmp.ne.s32.totalorder %s26, %s40
      %p42 = scmp.eq.s32.totalorder %s21, 0
      %p43 = por %p41, %p42
      %s44 = ssub.s32 %s15, %s22
      %p45 = scmp.eq.s32.totalorder %s44, 0
      %s47 = sadd.s32 %s46, 1
      %s48 = scalar_select %p45, %s46, %s47
      %p51 = pneg %p45
      %p52 = scmp.eq.s32.totalorder %s15, 1
      %p53 = por %p51, %p52
      %p54 = scmp.ne.s32.totalorder %s46, %s49
      %p55 = scmp.eq.s32.totalorder %s15, 0
      %p56 = por %p54, %p55
      %p57 = scmp.ne.s32.totalorder %s46, %s49
      %p58 = scmp.eq.s32.totalorder %s20, 1
      %p59 = por %p57, %p58
      %p60 = scmp.ne.s32.totalorder %s49, %s50
      %p61 = scmp.eq.s32.totalorder %s20, 0
      %p62 = por %p60, %p61
      %p63 = scmp.ne.s32.totalorder %s49, %s50
      %p64 = scmp.eq.s32.totalorder %s21, 1
      %p65 = por %p63, %p64
      %p67 = scmp.ne.s32.totalorder %s50, %s66
      %p68 = scmp.eq.s32.totalorder %s21, 0
      %p69 = por %p67, %p68
      %s70 = ssub.s32 %s15, %s22
      %p71 = scmp.eq.s32.totalorder %s70, 0
      %s73 = sadd.s32 %s72, 1
      %s74 = scalar_select %p71, %s72, %s73
      %p77 = pneg %p71
      %p78 = scmp.eq.s32.totalorder %s15, 1
      %p79 = por %p77, %p78
      %p80 = scmp.ne.s32.totalorder %s72, %s75
      %p81 = scmp.eq.s32.totalorder %s15, 0
      %p82 = por %p80, %p81
      %p83 = scmp.ne.s32.totalorder %s72, %s75
      %p84 = scmp.eq.s32.totalorder %s20, 1
      %p85 = por %p83, %p84
      %p86 = scmp.ne.s32.totalorder %s75, %s76
      %p87 = scmp.eq.s32.totalorder %s20, 0
      %p88 = por %p86, %p87
      %p89 = scmp.ne.s32.totalorder %s75, %s76
      %p90 = scmp.eq.s32.totalorder %s21, 1
      %p91 = por %p89, %p90
      %p93 = scmp.ne.s32.totalorder %s76, %s92
      %p94 = scmp.eq.s32.totalorder %s21, 0
      %p95 = por %p93, %p94
      %p96 = scmp.le.s32.totalorder 1, %s15
      %p97 = scmp.lt.s32.totalorder %s15, 3
      %p98 = pnand %p96, %p97
      %p99 = pneg %p98
      // Predicated region
      $region9: #{tpu_custom_call.1} parent=5 // pred_check
        _
      $region10: #{tpu_custom_call.1} parent=5 // pred_check_branch
        %101 = sbr.rel (%p98) target = $region12
      $region11: #{tpu_custom_call.1} parent=5 // pred_region
        %s102 = ssub.s32 %s15, 1
        // Predicated region
        $region13: #{tpu_custom_call.1} parent=11 // pred_check
          %p103 = pneg %p36
        $region14: #{tpu_custom_call.1} parent=11 // pred_check_branch
          %105 = sbr.rel (%p103) target = $region16
        $region15: #{tpu_custom_call.1} parent=11 // pred_region
          %s107 = ssub.s32 16, 16
          %108 = vsyncadd [#allocation3], %s107
          %s110 = sshll.u32 [#allocation2], 4
          %s111 = int_to_ptr.vmem [resolvable:$true] %s110
          %113 = dma.hbm_to_vmem [thread:$0]  %s0, 16, %s111, [#allocation3]
        $region16: #{tpu_custom_call.1} parent=11 // pred_fallthru
          _
      $region12: #{tpu_custom_call.1} parent=5 // pred_fallthru
        _
      %p114 = scmp.lt.s32.totalorder %s15, 2
      // Predicated region
      $region17: #{tpu_custom_call.1} parent=5 // pred_check
        %p115 = pneg %p114
      $region18: #{tpu_custom_call.1} parent=5 // pred_check_branch
        %117 = sbr.rel (%p115) target = $region20
      $region19: #{tpu_custom_call.1} parent=5 // pred_region
        // Predicated region
        $region21: #{tpu_custom_call.1} parent=19 // pred_check
          %p118 = pneg %p56
        $region22: #{tpu_custom_call.1} parent=19 // pred_check_branch
          %120 = sbr.rel (%p118) target = $region24
        $region23: #{tpu_custom_call.1} parent=19 // pred_region
          %s121 = sand.u32 %s46, 1
          %s122 = scalar_lea.sflag [#allocation6], %s121
          %s123 = sand.u32 %s46, 1
          %s124 = smul.addr %s123, 8
          %s125 = scalar_lea.vmem [#allocation5], %s124
          %s127 = ssub.s32 128, 128
          %128 = vsyncadd %s122, %s127
          %s129 = smul.addr %s15, 128
          %s130 = scalar_lea.hbm %s1, %s129
          %s132 = sshll.u32 %s125, 4
          %s133 = int_to_ptr.vmem [resolvable:$true] %s132
          %135 = dma.hbm_to_vmem [thread:$0]  %s130, 128, %s133, %s122
        $region24: #{tpu_custom_call.1} parent=19 // pred_fallthru
          _
      $region20: #{tpu_custom_call.1} parent=5 // pred_fallthru
        _
      %p136 = scmp.le.s32.totalorder 1, %s15
      %p137 = scmp.lt.s32.totalorder %s15, 3
      %p138 = pnand %p136, %p137
      %p139 = pneg %p138
      // Predicated region
      $region25: #{tpu_custom_call.1} parent=5 // pred_check
        _
      $region26: #{tpu_custom_call.1} parent=5 // pred_check_branch
        %141 = sbr.rel (%p138) target = $region28
      $region27: #{tpu_custom_call.1} parent=5 // pred_region
        %s142 = ssub.s32 %s15, 1
        // Predicated region
        $region29: #{tpu_custom_call.1} parent=27 // pred_check
          %p143 = pneg %p36
        $region30: #{tpu_custom_call.1} parent=27 // pred_check_branch
          %145 = sbr.rel (%p143) target = $region32
        $region31: #{tpu_custom_call.1} parent=27 // pred_region
          %146 = dma.done [#allocation3], 16
        $region32: #{tpu_custom_call.1} parent=27 // pred_fallthru
          _
        %s147 = sand.u32 %s49, 1
        %s148 = scalar_lea.sflag [#allocation6], %s147
        %s149 = sand.u32 %s49, 1
        %s150 = smul.addr %s149, 8
        %s151 = scalar_lea.vmem [#allocation5], %s150
        // Predicated region
        $region33: #{tpu_custom_call.1} parent=27 // pred_check
          %p152 = pneg %p62
        $region34: #{tpu_custom_call.1} parent=27 // pred_check_branch
          %154 = sbr.rel (%p152) target = $region36
        $region35: #{tpu_custom_call.1} parent=27 // pred_region
          %155 = dma.done %s148, 128
        $region36: #{tpu_custom_call.1} parent=27 // pred_fallthru
          _
        %p156 = pneg %p36
        %p157 = pneg %p33
        %s158 = sand.u32 %s49, 1
        %s159 = scalar_lea.sflag [#allocation6], %s158
        %s160 = sand.u32 %s49, 1
        %s161 = smul.addr %s160, 8
        %s162 = scalar_lea.vmem [#allocation5], %s161
        %p163 = pneg %p62
        %p164 = pneg %p59
        %p165 = pneg %p88
        %p166 = pneg %p85
        %s167 = sand.u32 %s75, 1
        %s168 = scalar_lea.sflag [#allocation4], %s167
        %s169 = sand.u32 %s75, 1
        %s170 = smul.addr %s169, 8
        %s171 = scalar_lea.vmem [#allocation7], %s170
        %v172 = vld [vmem:[%s151] sm:$0xff]
        %v173 = vld [vmem:[#allocation2] sm:$0x1]
        %v174 = vand.u32 2147483647, %v173
        %v176 = vlaneseq
        %v177 = vshrl.u32 %v176, 7
        %v178 = vsub.s32 0, %v177
        %v179 = vrot.slane %v174, %v178
        %v181 = vmul.f32 %v172, %v179
        %v182 = vrsqrt.pop %v181
        %v183 = vmul.f32 %v181, %v182
        %vm184 = vcmp.eq.f32.partialorder %v181, inf
        %v185 = vsel %vm184, %v181, %v183
        %vm186 = vcmp.eq.f32.partialorder %v181, 0.0
        %v187 = vand.u32 %v181, 2147483648
        %v188 = vsel %vm186, %v187, %v185
        %v190 = vlaneseq
        %v191 = vshrl.u32 %v190, 7
        %v192 = vsub.s32 0, %v191
        %v193 = vrot.slane %v173, %v192
        %v195 = vmul.f32 %v188, %v193
        %196 = vadd.xlane.f32.xlu0 %v195
        %v197 = vpop.xlane.xlu0 %196
        %v198 = vadd.f32 %v197, 1.0
        %v199 = vmax.f32 %v198, 0.0
        %v200 = vrot.slane %v199, 4
        %v201 = vadd.f32 %v199, %v200
        %v202 = vrot.slane %v201, 2
        %v203 = vadd.f32 %v201, %v202
        %v204 = vrot.slane %v203, 1
        %v205 = vadd.f32 %v203, %v204
        %206 = vst [vmem:[%s171] sm:$0xff] %v205
        %s207 = sand.u32 %s75, 1
        %s208 = scalar_lea.sflag [#allocation4], %s207
        %s209 = sand.u32 %s75, 1
        %s210 = smul.addr %s209, 8
        %s211 = scalar_lea.vmem [#allocation7], %s210
        // Predicated region
        $region37: #{tpu_custom_call.1} parent=27 // pred_check
          %p212 = pneg %p85
        $region38: #{tpu_custom_call.1} parent=27 // pred_check_branch
          %214 = sbr.rel (%p212) target = $region40
        $region39: #{tpu_custom_call.1} parent=27 // pred_region
          %s216 = ssub.s32 128, 128
          %217 = vsyncadd %s208, %s216
          %s218 = smul.addr %s20, 128
          %s219 = scalar_lea.hbm %s2, %s218
          %s221 = sshll.u32 %s211, 4
          %s222 = int_to_ptr.vmem [resolvable:$true] %s221
          %224 = dma.vmem_to_hbm [thread:$0]  %s222, 128, %s219, %s208
        $region40: #{tpu_custom_call.1} parent=27 // pred_fallthru
          _
      $region28: #{tpu_custom_call.1} parent=5 // pred_fallthru
        _
      %p225 = scmp.le.s32.totalorder 2, %s15
      // Predicated region
      $region41: #{tpu_custom_call.1} parent=5 // pred_check
        %p226 = pneg %p225
      $region42: #{tpu_custom_call.1} parent=5 // pred_check_branch
        %228 = sbr.rel (%p226) target = $region44
      $region43: #{tpu_custom_call.1} parent=5 // pred_region
        %s229 = ssub.s32 %s15, 2
        // Predicated region
        $region45: #{tpu_custom_call.1} parent=43 // pred_check
          %p230 = pneg %p91
        $region46: #{tpu_custom_call.1} parent=43 // pred_check_branch
          %232 = sbr.rel (%p230) target = $region48
        $region47: #{tpu_custom_call.1} parent=43 // pred_region
          %s233 = sand.u32 %s76, 1
          %s234 = scalar_lea.sflag [#allocation4], %s233
          %s235 = sand.u32 %s76, 1
          %s236 = smul.addr %s235, 8
          %s237 = scalar_lea.vmem [#allocation7], %s236
          %238 = dma.done %s234, 128
        $region48: #{tpu_custom_call.1} parent=43 // pred_fallthru
          _
      $region44: #{tpu_custom_call.1} parent=5 // pred_fallthru
        _
    $region6: #{tpu_custom_call.1} parent=1 // loop_footer
      %s19 = sadd.s32 1, %s15
    $region7: #{tpu_custom_call.1} parent=1 // loop_footer_branch
      %14 = sbr.rel target = $region3
    $region8: #{tpu_custom_call.1} parent=1 // loop_exit
      _
    %239 = vsyncpa [#allocation3], 1
    %s240 = scalar_lea.sflag [#allocation3], 1
    %241 = vsyncpa %s240, 1
    %242 = vsyncpa [#allocation6], 1
    %s243 = scalar_lea.sflag [#allocation6], 1
    %244 = vsyncpa %s243, 1
    %245 = vsyncpa [#allocation4], 1
    %s246 = scalar_lea.sflag [#allocation4], 1
    %247 = vsyncpa %s246, 1

</llo_original>
